<compile_context>
chip_gen: v5e
topology: v5e:2x2
jax: 0.10.0
libtpu: 0.0.40
codegen_flags: <defaults>
</compile_context>

<pallas_src>
import functools

import jax
import jax.numpy as jnp
from jax.experimental import pallas as pl
from jax.experimental.pallas import tpu as pltpu


def _mura_loss_kernel(scalars_ref, x_ref, y_ref, out_ref, bce_acc, ce_acc,
                      *, total_rows, block_rows):
    # scalars_ref: SMEM (3,) f32  = [1/B, bce_weight, ce_weight]
    # x_ref      : VMEM (TB, K)   logits block (col 0 = binary head, cols 1.. = classes)
    # y_ref      : VMEM (TB, 2)   targets block (col 0 = binary target, col 1 = class idx)
    # out_ref    : SMEM (3,)      [bce_loss, ce_loss, loss]
    # bce_acc/ce_acc: VMEM (TB, 1) f32 resident per-row partial-loss accumulators
    i = pl.program_id(0)

    @pl.when(i == 0)
    def _init():
        bce_acc[...] = jnp.zeros_like(bce_acc)
        ce_acc[...] = jnp.zeros_like(ce_acc)

    x = x_ref[...].astype(jnp.float32)            # (TB, K) f32
    yv = y_ref[...].astype(jnp.float32)           # (TB, 2)
    t0 = yv[:, 0:1]                               # (TB, 1) binary target
    t1 = jnp.round(yv[:, 1:2]).astype(jnp.int32)  # (TB, 1) class index (round, then cast)

    tb, kk = x.shape
    # Row-validity mask for the (possibly ragged) last block.
    row_ids = i * block_rows + jax.lax.broadcasted_iota(jnp.int32, (tb, 1), 0)
    valid = row_ids < total_rows                  # (TB, 1)

    lane = jax.lax.broadcasted_iota(jnp.int32, (tb, kk), 1)   # (TB, K)
    is_cls = lane >= 1                                        # class-head lanes

    # ---- BCE with logits on lane 0 (numerically stable), per-row ----
    p0 = x[:, 0:1]                                            # lane-0-aligned slice
    bce = jnp.maximum(p0, 0.0) - p0 * t0 + jnp.log1p(jnp.exp(-jnp.abs(p0)))
    bce_acc[...] += jnp.where(valid, bce, 0.0)

    # ---- Cross entropy: masked log-softmax over the class lanes, per-row ----
    xc = jnp.where(is_cls, x, -jnp.inf)
    m = jnp.max(xc, axis=1, keepdims=True)                    # (TB, 1)
    sumexp = jnp.sum(jnp.exp(xc - m), axis=1, keepdims=True)  # (TB, 1)
    lse = jnp.log(sumexp) + m                                 # (TB, 1)
    tgt = jnp.sum(jnp.where(lane == t1 + 1, x, 0.0), axis=1, keepdims=True)
    ce_acc[...] += jnp.where(valid, lse - tgt, 0.0)

    # ---- Finalize: single cross-sublane reduce + scalar SMEM stores ----
    @pl.when(i == pl.num_programs(0) - 1)
    def _finalize():
        inv_b = scalars_ref[0]
        bce_loss = jnp.sum(bce_acc[...]) * inv_b
        ce_loss = jnp.sum(ce_acc[...]) * inv_b
        out_ref[0] = bce_loss
        out_ref[1] = ce_loss
        out_ref[2] = bce_loss * scalars_ref[1] + ce_loss * scalars_ref[2]


def mura_bce_ce_loss(logits, y, *, bce_weight=1.0, ce_weight=1.0, block_rows=2048):
    """logits: (B, 1+C); y: (B, 2) with y[:,0] = binary target, y[:,1] = class index."""
    B, K = logits.shape
    assert K >= 2, "need 1 binary logit + at least 1 class logit"
    assert y.shape == (B, 2), "y must be (B, 2)"

    if block_rows >= B:
        tb = B                                   # single block (any B: equals the full dim)
    else:
        tb = max(8, (block_rows // 8) * 8)       # blocked row count must be a multiple of 8
    grid = (pl.cdiv(B, tb),)

    # Runtime scalars -> one compiled kernel serves every (bce_weight, ce_weight) combination.
    scalars = jnp.array([1.0 / B, bce_weight, ce_weight], dtype=jnp.float32)

    kernel = functools.partial(_mura_loss_kernel, total_rows=B, block_rows=tb)

    out = pl.pallas_call(
        kernel,
        grid=grid,
        in_specs=[
            pl.BlockSpec(memory_space=pltpu.MemorySpace.SMEM),   # [1/B, bce_w, ce_w]
            pl.BlockSpec((tb, K), lambda i: (i, 0)),             # logits block
            pl.BlockSpec((tb, 2), lambda i: (i, 0)),             # targets block
        ],
        out_specs=pl.BlockSpec(memory_space=pltpu.MemorySpace.SMEM),
        out_shape=jax.ShapeDtypeStruct((3,), jnp.float32),
        scratch_shapes=[
            pltpu.VMEM((tb, 1), jnp.float32),                    # bce per-row accumulator
            pltpu.VMEM((tb, 1), jnp.float32),                    # ce per-row accumulator
        ],
        compiler_params=pltpu.CompilerParams(
            dimension_semantics=("arbitrary",)),                 # batch axis is a reduction
    )(scalars, logits, y)

    return {"bce_loss": out[0], "ce_loss": out[1], "loss": out[2]}


def _reference(logits, y, *, bce_weight=1.0, ce_weight=1.0):
    """Plain-JAX replica of the PyTorch forward (for verification)."""
    p0 = logits[:, 0].astype(jnp.float32)
    t0 = y[:, 0].astype(jnp.float32)
    p1 = logits[:, 1:].astype(jnp.float32)
    t1 = jnp.round(y[:, 1].astype(jnp.float32)).astype(jnp.int32)

    bce = jnp.mean(jnp.maximum(p0, 0.0) - p0 * t0 + jnp.log1p(jnp.exp(-jnp.abs(p0))))
    logp = jax.nn.log_softmax(p1, axis=-1)
    ce = -jnp.mean(jnp.take_along_axis(logp, t1[:, None], axis=-1))
    return {"bce_loss": bce, "ce_loss": ce,
            "loss": bce * bce_weight + ce * ce_weight}


def _check(out, ref):
    for name in ("bce_loss", "ce_loss", "loss"):
        assert jnp.allclose(out[name], ref[name], rtol=1e-5, atol=1e-5), \
            (name, out[name], ref[name])


if __name__ == "__main__":
    key = jax.random.PRNGKey(0)

    # --- Small case (single block): logits (8, 8), y (8, 2) ---
    B, C = 8, 7
    k1, k2, k3 = jax.random.split(key, 3)
    logits = jax.random.normal(k1, (B, 1 + C), dtype=jnp.float32)
    t0 = jax.random.bernoulli(k2, 0.5, (B,)).astype(jnp.float32)
    t1 = jax.random.randint(k3, (B,), 0, C).astype(jnp.float32)
    y = jnp.stack([t0, t1], axis=1)                              # batch['y'], shape (B, 2)

    params = {"bce_weight": 0.5, "ce_weight": 2.0}
    out = mura_bce_ce_loss(logits, y, **params)
    jax.block_until_ready(out["loss"])
    _check(out, _reference(logits, y, **params))

    # --- bf16 logits path (HBM traffic halved; math stays f32 in-kernel) ---
    out_bf16 = mura_bce_ce_loss(logits.astype(jnp.bfloat16), y, **params)
    jax.block_until_ready(out_bf16["loss"])
    _check(out_bf16, _reference(logits.astype(jnp.bfloat16), y, **params))

    # --- Multi-block grid with ragged last block: B=300, block_rows=128 (grid=3) ---
    B2 = 300
    k4, k5, k6 = jax.random.split(jax.random.PRNGKey(1), 3)
    logits2 = jax.random.normal(k4, (B2, 1 + C), dtype=jnp.float32)
    t0_2 = jax.random.bernoulli(k5, 0.5, (B2,)).astype(jnp.float32)
    t1_2 = jax.random.randint(k6, (B2,), 0, C).astype(jnp.float32)
    y2 = jnp.stack([t0_2, t1_2], axis=1)

    out2 = mura_bce_ce_loss(logits2, y2, bce_weight=1.0, ce_weight=1.0, block_rows=128)
    jax.block_until_ready(out2["loss"])
    _check(out2, _reference(logits2, y2, bce_weight=1.0, ce_weight=1.0))

    print("KERNEL_OK")
</pallas_src>

<mosaic_0001>
module attributes {stable_mosaic.version = 11 : i64} {
  func.func @_mura_loss_kernel(%arg0: i32, %arg1: memref<3xf32, #tpu.memory_space<smem>>, %arg2: memref<8x8xf32, #tpu.memory_space<vmem>>, %arg3: memref<8x2xf32, #tpu.memory_space<vmem>>, %arg4: memref<3xf32, #tpu.memory_space<smem>>, %arg5: memref<8x1xf32, #tpu.memory_space<vmem>>, %arg6: memref<8x1xf32, #tpu.memory_space<vmem>>) attributes {dimension_semantics = [#tpu.dimension_semantics<arbitrary>], iteration_bounds = array<i64: 1>, scalar_prefetch = 0 : i64, scratch_operands = 2 : i64, tpu.core_type = #tpu.core_type<tc>, window_params = [{transform_indices = @transform_0, window_bounds = array<i64: 3>}, {transform_indices = @transform_1, window_bounds = array<i64: 8, 8>}, {transform_indices = @transform_2, window_bounds = array<i64: 8, 2>}, {transform_indices = @transform_3, window_bounds = array<i64: 3>}]} {
    %c0_i32 = arith.constant 0 : i32
    %0 = arith.cmpi eq, %arg0, %c0_i32 : i32
    %1 = arith.extui %0 : i1 to i32
    %c0_i32_0 = arith.constant 0 : i32
    %2 = arith.cmpi ne, %1, %c0_i32_0 : i32
    scf.if %2 {
      %cst_24 = arith.constant 0.000000e+00 : f32
      %62 = vector.broadcast %cst_24 : f32 to vector<8x1xf32>
      %c0_25 = arith.constant 0 : index
      %c0_26 = arith.constant 0 : index
      %63 = vector.load %arg5[%c0_25, %c0_26] : memref<8x1xf32, #tpu.memory_space<vmem>>, vector<8x1xf32>
      tpu.vector_store %arg5[%c0_25, %c0_26], %62 {strides = array<i32>} : memref<8x1xf32, #tpu.memory_space<vmem>>, vector<8x1xf32>,
      %cst_27 = arith.constant 0.000000e+00 : f32
      %64 = vector.broadcast %cst_27 : f32 to vector<8x1xf32>
      %c0_28 = arith.constant 0 : index
      %c0_29 = arith.constant 0 : index
      %65 = vector.load %arg6[%c0_28, %c0_29] : memref<8x1xf32, #tpu.memory_space<vmem>>, vector<8x1xf32>
      tpu.vector_store %arg6[%c0_28, %c0_29], %64 {strides = array<i32>} : memref<8x1xf32, #tpu.memory_space<vmem>>, vector<8x1xf32>,
    } else {
    }
    %c0 = arith.constant 0 : index
    %c0_1 = arith.constant 0 : index
    %3 = vector.load %arg2[%c0, %c0_1] : memref<8x8xf32, #tpu.memory_space<vmem>>, vector<8x8xf32>
    %c0_2 = arith.constant 0 : index
    %c0_3 = arith.constant 0 : index
    %4 = vector.load %arg3[%c0_2, %c0_3] : memref<8x2xf32, #tpu.memory_space<vmem>>, vector<8x2xf32>
    %5 = vector.extract_strided_slice %4 {offsets = [0, 0], sizes = [8, 1], strides = [1, 1]} : vector<8x2xf32> to vector<8x1xf32>
    %6 = vector.extract_strided_slice %4 {offsets = [0, 1], sizes = [8, 1], strides = [1, 1]} : vector<8x2xf32> to vector<8x1xf32>
    %7 = math.roundeven %6 : vector<8x1xf32>
    %8 = arith.fptosi %7 : vector<8x1xf32> to vector<8x1xi32>
    %c8_i32 = arith.constant 8 : i32
    %9 = arith.muli %arg0, %c8_i32 : i32
    %10 = tpu.iota {dimensions = array<i32: 0>} : vector<8x1xi32>
    %11 = vector.broadcast %9 : i32 to vector<8x1xi32>
    %12 = arith.addi %11, %10 : vector<8x1xi32>
    %c8_i32_4 = arith.constant 8 : i32
    %13 = vector.broadcast %c8_i32_4 : i32 to vector<8x1xi32>
    %14 = arith.cmpi slt, %12, %13 : vector<8x1xi32>
    %15 = tpu.iota {dimensions = array<i32: 1>} : vector<8x8xi32>
    %c1_i32 = arith.constant 1 : i32
    %16 = vector.broadcast %c1_i32 : i32 to vector<8x8xi32>
    %17 = arith.cmpi sge, %15, %16 : vector<8x8xi32>
    %18 = vector.extract_strided_slice %3 {offsets = [0, 0], sizes = [8, 1], strides = [1, 1]} : vector<8x8xf32> to vector<8x1xf32>
    %cst = arith.constant 0.000000e+00 : f32
    %19 = vector.broadcast %cst : f32 to vector<8x1xf32>
    %20 = arith.maximumf %18, %19 : vector<8x1xf32>
    %21 = arith.mulf %18, %5 : vector<8x1xf32>
    %22 = arith.subf %20, %21 : vector<8x1xf32>
    %23 = math.absf %18 : vector<8x1xf32>
    %cst_5 = arith.constant 0.000000e+00 : f32
    %24 = vector.broadcast %cst_5 : f32 to vector<8x1xf32>
    %25 = arith.subf %24, %23 : vector<8x1xf32>
    %26 = math.exp %25 : vector<8x1xf32>
    %27 = math.log1p %26 : vector<8x1xf32>
    %28 = arith.addf %22, %27 : vector<8x1xf32>
    %c0_6 = arith.constant 0 : index
    %c0_7 = arith.constant 0 : index
    %29 = vector.load %arg5[%c0_6, %c0_7] : memref<8x1xf32, #tpu.memory_space<vmem>>, vector<8x1xf32>
    %cst_8 = arith.constant 0.000000e+00 : f32
    %30 = vector.broadcast %cst_8 : f32 to vector<8x1xf32>
    %31 = arith.select %14, %28, %30 : vector<8x1xi1>, vector<8x1xf32>
    %32 = arith.addf %29, %31 : vector<8x1xf32>
    %c0_9 = arith.constant 0 : index
    %c0_10 = arith.constant 0 : index
    %33 = vector.load %arg5[%c0_9, %c0_10] : memref<8x1xf32, #tpu.memory_space<vmem>>, vector<8x1xf32>
    tpu.vector_store %arg5[%c0_9, %c0_10], %32 {strides = array<i32>} : memref<8x1xf32, #tpu.memory_space<vmem>>, vector<8x1xf32>,
    %cst_11 = arith.constant 0xFF800000 : f32
    %34 = vector.broadcast %cst_11 : f32 to vector<8x8xf32>
    %35 = arith.select %17, %3, %34 : vector<8x8xi1>, vector<8x8xf32>
    %cst_12 = arith.constant dense<0xFF800000> : vector<8xf32>
    %36 = vector.multi_reduction <maximumf>, %35, %cst_12 [1] : vector<8x8xf32> to vector<8xf32>
    %37 = vector.shape_cast %36 : vector<8xf32> to vector<8x1xf32>
    %38 = vector.broadcast %37 : vector<8x1xf32> to vector<8x8xf32>
    %39 = arith.subf %35, %38 : vector<8x8xf32>
    %40 = math.exp %39 : vector<8x8xf32>
    %cst_13 = arith.constant dense<0.000000e+00> : vector<8xf32>
    %41 = vector.multi_reduction <add>, %40, %cst_13 [1] : vector<8x8xf32> to vector<8xf32>
    %42 = vector.shape_cast %41 : vector<8xf32> to vector<8x1xf32>
    %43 = math.log %42 : vector<8x1xf32>
    %44 = arith.addf %43, %37 : vector<8x1xf32>
    %c1_i32_14 = arith.constant 1 : i32
    %45 = vector.broadcast %c1_i32_14 : i32 to vector<8x1xi32>
    %46 = arith.addi %8, %45 : vector<8x1xi32>
    %47 = vector.broadcast %46 : vector<8x1xi32> to vector<8x8xi32>
    %48 = arith.cmpi eq, %15, %47 : vector<8x8xi32>
    %cst_15 = arith.constant 0.000000e+00 : f32
    %49 = vector.broadcast %cst_15 : f32 to vector<8x8xf32>
    %50 = arith.select %48, %3, %49 : vector<8x8xi1>, vector<8x8xf32>
    %cst_16 = arith.constant dense<0.000000e+00> : vector<8xf32>
    %51 = vector.multi_reduction <add>, %50, %cst_16 [1] : vector<8x8xf32> to vector<8xf32>
    %52 = vector.shape_cast %51 : vector<8xf32> to vector<8x1xf32>
    %c0_17 = arith.constant 0 : index
    %c0_18 = arith.constant 0 : index
    %53 = vector.load %arg6[%c0_17, %c0_18] : memref<8x1xf32, #tpu.memory_space<vmem>>, vector<8x1xf32>
    %54 = arith.subf %44, %52 : vector<8x1xf32>
    %cst_19 = arith.constant 0.000000e+00 : f32
    %55 = vector.broadcast %cst_19 : f32 to vector<8x1xf32>
    %56 = arith.select %14, %54, %55 : vector<8x1xi1>, vector<8x1xf32>
    %57 = arith.addf %53, %56 : vector<8x1xf32>
    %c0_20 = arith.constant 0 : index
    %c0_21 = arith.constant 0 : index
    %58 = vector.load %arg6[%c0_20, %c0_21] : memref<8x1xf32, #tpu.memory_space<vmem>>, vector<8x1xf32>
    tpu.vector_store %arg6[%c0_20, %c0_21], %57 {strides = array<i32>} : memref<8x1xf32, #tpu.memory_space<vmem>>, vector<8x1xf32>,
    %c0_i32_22 = arith.constant 0 : i32
    %59 = arith.cmpi eq, %arg0, %c0_i32_22 : i32
    %60 = arith.extui %59 : i1 to i32
    %c0_i32_23 = arith.constant 0 : i32
    %61 = arith.cmpi ne, %60, %c0_i32_23 : i32
    scf.if %61 {
      %c0_24 = arith.constant 0 : index
      %62 = memref.load %arg1[%c0_24] : memref<3xf32, #tpu.memory_space<smem>>
      %c0_25 = arith.constant 0 : index
      %c0_26 = arith.constant 0 : index
      %63 = vector.load %arg5[%c0_25, %c0_26] : memref<8x1xf32, #tpu.memory_space<vmem>>, vector<8x1xf32>
      %64 = vector.shape_cast %63 : vector<8x1xf32> to vector<1x8x1xf32>
      %cst_27 = arith.constant dense<0.000000e+00> : vector<1xf32>
      %65 = vector.multi_reduction <add>, %64, %cst_27 [1, 2] : vector<1x8x1xf32> to vector<1xf32>
      %66 = vector.shape_cast %65 : vector<1xf32> to vector<1x1x1xf32>
      %67 = vector.extract %66[0, 0, 0] : f32 from vector<1x1x1xf32>
      %68 = arith.mulf %67, %62 : f32
      %c0_28 = arith.constant 0 : index
      %c0_29 = arith.constant 0 : index
      %69 = vector.load %arg6[%c0_28, %c0_29] : memref<8x1xf32, #tpu.memory_space<vmem>>, vector<8x1xf32>
      %70 = vector.shape_cast %69 : vector<8x1xf32> to vector<1x8x1xf32>
      %cst_30 = arith.constant dense<0.000000e+00> : vector<1xf32>
      %71 = vector.multi_reduction <add>, %70, %cst_30 [1, 2] : vector<1x8x1xf32> to vector<1xf32>
      %72 = vector.shape_cast %71 : vector<1xf32> to vector<1x1x1xf32>
      %73 = vector.extract %72[0, 0, 0] : f32 from vector<1x1x1xf32>
      %74 = arith.mulf %73, %62 : f32
      %c0_31 = arith.constant 0 : index
      %75 = memref.load %arg4[%c0_31] : memref<3xf32, #tpu.memory_space<smem>>
      memref.store %68, %arg4[%c0_31] : memref<3xf32, #tpu.memory_space<smem>>
      %c1 = arith.constant 1 : index
      %76 = memref.load %arg4[%c1] : memref<3xf32, #tpu.memory_space<smem>>
      memref.store %74, %arg4[%c1] : memref<3xf32, #tpu.memory_space<smem>>
      %c1_32 = arith.constant 1 : index
      %77 = memref.load %arg1[%c1_32] : memref<3xf32, #tpu.memory_space<smem>>
      %78 = arith.mulf %68, %77 : f32
      %c2 = arith.constant 2 : index
      %79 = memref.load %arg1[%c2] : memref<3xf32, #tpu.memory_space<smem>>
      %80 = arith.mulf %74, %79 : f32
      %81 = arith.addf %78, %80 : f32
      %c2_33 = arith.constant 2 : index
      %82 = memref.load %arg4[%c2_33] : memref<3xf32, #tpu.memory_space<smem>>
      memref.store %81, %arg4[%c2_33] : memref<3xf32, #tpu.memory_space<smem>>
    } else {
    }
    return
  }
  func.func @transform_0(%arg0: i32) -> i32 {
    %c0_i32 = arith.constant 0 : i32
    %c0_i32_0 = arith.constant 0 : i32
    return %c0_i32 : i32
  }
  func.func @transform_1(%arg0: i32) -> (i32, i32) {
    %c0_i32 = arith.constant 0 : i32
    %c0_i32_0 = arith.constant 0 : i32
    return %arg0, %c0_i32 : i32, i32
  }
  func.func @transform_2(%arg0: i32) -> (i32, i32) {
    %c0_i32 = arith.constant 0 : i32
    %c0_i32_0 = arith.constant 0 : i32
    return %arg0, %c0_i32 : i32, i32
  }
  func.func @transform_3(%arg0: i32) -> i32 {
    %c0_i32 = arith.constant 0 : i32
    %c0_i32_0 = arith.constant 0 : i32
    return %c0_i32 : i32
  }
}

</mosaic_0001>

<llo_original>
// kernel: tpu_custom_call.1
$region0: #{tpu_custom_call.1}
  #allocation0 [shape = 'u32[]', space=smem, size = 0x4, offset = 0x4, fixed_abs, tag = 'smem constant byte address 0x4 - core index']
  #allocation1 [shape = 'u32[72,128]{1,0:T(1,128)}', space=vmem, size = 0x9000, scoped, tag = 'internal scratch']
  #allocation2 [shape = 'f32[8,1]{1,0:T(8,128)}', space=vmem, size = 0x1000, scoped, tag = 'scratch operand']
  #allocation3 [shape = 'f32[8,1]{1,0:T(8,128)}', space=vmem, size = 0x1000, scoped, tag = 'scratch operand']
  %s0 = inlined_call_operand.vmem [shape: f32[3], index: 0, kind: input, shape index: {}]
  %s1 = inlined_call_operand.vmem [shape: f32[8,8], index: 1, kind: input, shape index: {}]
  %s2 = inlined_call_operand.vmem [shape: f32[8,2], index: 2, kind: input, shape index: {}]
  %s3 = inlined_call_operand.hbm [shape: f32[3], index: 3, kind: output, shape index: {}]
  %s4 = sld [smem:[#allocation0]]
  $region34: #{tpu_custom_call.1} parent=0
    _
  %s6 = ssub.s32 1, %s4
  %s7 = scalar_select 0, %s6, %s4
  $region1: #{tpu_custom_call.1} parent=0
    #allocation4 [shape = 'u8[512]{0}', space=smem, size = 0x200, scoped, tag = 'input window, operand 0, single buffered']
    #allocation5 [shape = 's32[1]{0}', space=sflag, size = 0x4, scoped, tag = 'scoped memory for tpu_custom_call.1']
    #allocation6 [shape = 's32[1]{0}', space=sflag, size = 0x4, scoped, tag = 'scoped memory for tpu_custom_call.1']
    #allocation7 [shape = 'u8[512]{0}', space=smem, size = 0x200, scoped, tag = 'output window, operand 0, single buffered']
    %8 = vsyncpa [#allocation6], 0
    %9 = vsyncpa [#allocation5], 0
    // Predicated region
    $region2: #{tpu_custom_call.1} parent=1 // pred_check
      _
    $region3: #{tpu_custom_call.1} parent=1 // pred_check_branch
      %11 = sbr.rel (0) target = $region5
    $region4: #{tpu_custom_call.1} parent=1 // pred_region
      %13 = vsyncadd [#allocation6], 0
      %s15 = sshll.u32 %s0, 4
      %s16 = int_to_ptr.vmem [resolvable:$true] %s15
      %18 = dma.vmem_to_smem %s16, 16, [#allocation4], [#allocation6]
    $region5: #{tpu_custom_call.1} parent=1 // pred_fallthru
      _
    // Predicated region
    $region6: #{tpu_custom_call.1} parent=1 // pred_check
      _
    $region7: #{tpu_custom_call.1} parent=1 // pred_check_branch
      %20 = sbr.rel (0) target = $region9
    $region8: #{tpu_custom_call.1} parent=1 // pred_region
      _
    $region9: #{tpu_custom_call.1} parent=1 // pred_fallthru
      _
    // Predicated region
    $region10: #{tpu_custom_call.1} parent=1 // pred_check
      _
    $region11: #{tpu_custom_call.1} parent=1 // pred_check_branch
      %22 = sbr.rel (0) target = $region13
    $region12: #{tpu_custom_call.1} parent=1 // pred_region
      _
    $region13: #{tpu_custom_call.1} parent=1 // pred_fallthru
      _
    // Predicated region
    $region14: #{tpu_custom_call.1} parent=1 // pred_check
      _
    $region15: #{tpu_custom_call.1} parent=1 // pred_check_branch
      %24 = sbr.rel (0) target = $region17
    $region16: #{tpu_custom_call.1} parent=1 // pred_region
      %26 = dma.done [#allocation6], 16
    $region17: #{tpu_custom_call.1} parent=1 // pred_fallthru
      _
    %27 = sfence
    %p28 = scmp.eq.s32.totalorder 0, 0
    // Predicated region
    $region18: #{tpu_custom_call.1} parent=1 // pred_check
      %p29 = pneg %p28
    $region19: #{tpu_custom_call.1} parent=1 // pred_check_branch
      %31 = sbr.rel (%p29) target = $region21
    $region20: #{tpu_custom_call.1} parent=1 // pred_region
      %vm32 = vcmask 7168
      %33 = vst.msk [vmem:[#allocation2] sm:$0xff] %vm32, 0.0
      %34 = vst.msk [vmem:[#allocation3] sm:$0xff] %vm32, 0.0
    $region21: #{tpu_custom_call.1} parent=1 // pred_fallthru
      _
    %v35 = vld [vmem:[%s1] sm:$0xff]
    %v36 = vld [vmem:[%s2] sm:$0xff]
    %v37 = vcvt.f32.s32.ties.to.even %v36
    %s38 = smul.u32 0, 8
    %v39 = vlaneseq
    %v40 = vshrl.u32 %v39, 7
    %v41 = vstv %s38
    %v42 = vadd.s32 %v41, %v40
    %vm43 = vcmp.lt.s32.totalorder %v42, 8
    %v44 = vlaneseq
    %v45 = vand.u32 %v44, 127
    %vm46 = vcmp.ge.s32.totalorder %v45, 1
    %v47 = vmax.f32 %v35, 0.0
    %v48 = vmul.f32 %v35, %v36
    %v49 = vsub.f32 %v47, %v48
    %v50 = vand.u32 2147483647, %v35
    %v51 = vsub.f32 0.0, %v50
    %v52 = vmul.f32 %v51, 1.442695
    %v53 = vpow.pop %v52
    %v54 = vadd.f32 %v53, 1.0
    %v55 = vlog2.pop %v54
    %v56 = vmul.f32 %v55, 0.6931472
    %v57 = vmul.f32 -0.5, %v53
    %v58 = vadd.f32 %v57, 1.0
    %v59 = vmul.f32 %v58, %v53
    %v60 = vand.u32 2147483647, %v53
    %vm61 = vcmp.lt.f32.partialorder %v60, 0.0004427343
    %v62 = vsel %vm61, %v59, %v56
    %v63 = vadd.f32 %v49, %v62
    %v64 = vld [vmem:[#allocation2] sm:$0xff]
    %v65 = vsel %vm43, %v63, 0.0
    %v66 = vadd.f32 %v64, %v65
    %vm67 = vcmask 7168
    %68 = vst.msk [vmem:[#allocation2] sm:$0xff] %vm67, %v66
    %v69 = vsel %vm46, %v35, -inf
    %vm70 = vcmask 64512
    %v71 = vsel %vm70, %v69, -inf
    %72 = vmax.xlane.f32.xlu0 %v71
    %v73 = vpop.xlane.xlu0 %72
    %v74 = vsub.f32 %v69, %v73
    %v75 = vmul.f32 %v74, 1.442695
    %v76 = vpow.pop %v75
    %v77 = vsel %vm70, %v76, 0.0
    %78 = vadd.xlane.f32.xlu0 %v77
    %v79 = vpop.xlane.xlu0 %78
    %v80 = vlog2.pop %v79
    %v81 = vmul.f32 %v80, 0.6931472
    %v82 = vadd.f32 %v81, %v73
    %v83 = vadd.s32 %v37, 1
    %84 = vset.pattern.permute.xlu0 1
    %85 = vperm.xlu0 %84, %v83
    %v86 = vpop.permute.xlu0 %85
    %vm87 = vcmp.eq.s32.totalorder %v45, %v86
    %v88 = vsel %vm87, %v35, 0.0
    %v89 = vsel %vm70, %v88, 0.0
    %90 = vadd.xlane.f32.xlu0 %v89
    %v91 = vpop.xlane.xlu0 %90
    %v92 = vld [vmem:[#allocation3] sm:$0xff]
    %v93 = vsub.f32 %v82, %v91
    %v94 = vsel %vm43, %v93, 0.0
    %v95 = vadd.f32 %v92, %v94
    %96 = vst.msk [vmem:[#allocation3] sm:$0xff] %vm67, %v95
    // Predicated region
    $region22: #{tpu_custom_call.1} parent=1 // pred_check
      %p97 = pneg %p28
    $region23: #{tpu_custom_call.1} parent=1 // pred_check_branch
      %99 = sbr.rel (%p97) target = $region25
    $region24: #{tpu_custom_call.1} parent=1 // pred_region
      %s100 = sld [smem:[#allocation4]]
      %v101 = vld [vmem:[#allocation2] sm:$0xff]
      %v102 = vsel %vm67, %v101, 0.0
      %103 = vadd.xlane.f32.xlu0 %v102
      %v104 = vpop.xlane.xlu0 %103
      %v105 = vrot.slane %v104, 4
      %v106 = vadd.f32 %v104, %v105
      %v107 = vrot.slane %v106, 2
      %v108 = vadd.f32 %v106, %v107
      %v109 = vrot.slane %v108, 1
      %v110 = vadd.f32 %v108, %v109
      %s111 = vtos %v110
      %s112 = smul.f32 %s111, %s100
      %v113 = vld [vmem:[#allocation3] sm:$0xff]
      %v114 = vsel %vm67, %v113, 0.0
      %115 = vadd.xlane.f32.xlu0 %v114
      %v116 = vpop.xlane.xlu0 %115
      %v117 = vrot.slane %v116, 4
      %v118 = vadd.f32 %v116, %v117
      %v119 = vrot.slane %v118, 2
      %v120 = vadd.f32 %v118, %v119
      %v121 = vrot.slane %v120, 1
      %v122 = vadd.f32 %v120, %v121
      %s123 = vtos %v122
      %s124 = smul.f32 %s123, %s100
      %s125 = scalar_lea.smem [#allocation7], 0
      %126 = sst [smem:[%s125]] %s112
      %s127 = scalar_lea.smem [#allocation7], 1
      %128 = sst [smem:[%s127]] %s124
      %s129 = sld [smem:[#allocation4 + $0x1]]
      %s130 = smul.f32 %s112, %s129
      %s131 = sld [smem:[#allocation4 + $0x2]]
      %s132 = smul.f32 %s124, %s131
      %s133 = sadd.f32 %s130, %s132
      %s134 = scalar_lea.smem [#allocation7], 2
      %135 = sst [smem:[%s134]] %s133
    $region25: #{tpu_custom_call.1} parent=1 // pred_fallthru
      _
    // Predicated region
    $region26: #{tpu_custom_call.1} parent=1 // pred_check
      _
    $region27: #{tpu_custom_call.1} parent=1 // pred_check_branch
      %137 = sbr.rel (0) target = $region29
    $region28: #{tpu_custom_call.1} parent=1 // pred_region
      %139 = vsyncadd [#allocation5], 0
      %s141 = sshll.u32 %s3, 4
      %s142 = int_to_ptr.hbm [resolvable:$true] %s141
      %144 = dma.smem_to_hbm [#allocation7], 16, %s142, [#allocation5]
    $region29: #{tpu_custom_call.1} parent=1 // pred_fallthru
      _
    // Predicated region
    $region30: #{tpu_custom_call.1} parent=1 // pred_check
      _
    $region31: #{tpu_custom_call.1} parent=1 // pred_check_branch
      %146 = sbr.rel (0) target = $region33
    $region32: #{tpu_custom_call.1} parent=1 // pred_region
      %148 = dma.done [#allocation5], 16
    $region33: #{tpu_custom_call.1} parent=1 // pred_fallthru
      _
    %149 = sfence
    %150 = vsyncpa [#allocation5], 1
    %151 = vsyncpa [#allocation6], 1

</llo_original>
